<compile_context>
chip_gen: v5e
topology: v5e:2x2
jax: 0.10.0
libtpu: 0.0.40
codegen_flags: <defaults>
</compile_context>

<pallas_src>
import functools

import jax
import jax.numpy as jnp
from jax.experimental import pallas as pl
from jax.experimental.pallas import tpu as pltpu


def _round_up(x: int, m: int) -> int:
    return (x + m - 1) // m * m


def pgnn_kernel(x_ref, asumT_ref, bsum_ref, wflat_ref, out_ref, *,
                n_polytopes: int, dout_pad: int):
    x = x_ref[...]           # (TB, Din_aug)            f32 ([x | 1 | 0...])
    asumT = asumT_ref[...]   # (Din_aug, P_pad)         resident
    bsum = bsum_ref[...]     # (1, P_pad)               resident (padding cols = -1e9)
    wflat = wflat_ref[...]   # (Din_aug, P * Dout_pad)  resident (bias folded in)

    tb = x.shape[0]

    # ---- polytope memberships (one lane-dense MXU matmul) -------------------
    logits = jnp.dot(x, asumT, preferred_element_type=jnp.float32) - bsum  # (TB, P_pad)
    raw = jax.nn.sigmoid(-logits)                     # padded cols -> sigmoid(-1e9) == 0
    denom = jnp.sum(raw, axis=1, keepdims=True) + 1e-6
    m = raw * pl.reciprocal(denom, approx=False)      # (TB, P_pad)
    m_use = m[:, :n_polytopes]                        # (TB, P)

    # ---- mixture of affine maps: single fused MXU matmul (bias folded) ------
    lin = jnp.dot(x, wflat, preferred_element_type=jnp.float32)   # (TB, P*Dout_pad)
    lin3 = lin.reshape(tb, n_polytopes, dout_pad)                 # (TB, P, Dout_pad)
    out_ref[...] = jnp.sum(m_use[:, :, None] * lin3, axis=1)      # (TB, Dout_pad)


def pgnn_forward(x, A, b, W, c, *, batch_tile: int = 256):
    """Pallas PGNN forward. x:(B,Din)  A:(P,Din,Din)  b:(P,Din)  W:(P,Dout,Din)  c:(P,Dout)."""
    B, Din = x.shape
    P, Dout, _ = W.shape
    P_pad = _round_up(P, 128)
    Dout_pad = _round_up(Dout, 128)
    Din_aug = _round_up(Din + 1, 8)          # [x | 1 | zero pad] contraction dim

    # --- precompute / re-layout parameters outside the kernel ----------------
    AsumT = jnp.transpose(jnp.sum(A, axis=1))                          # (Din, P)
    AsumT = jnp.pad(AsumT, ((0, Din_aug - Din), (0, P_pad - P)))       # (Din_aug, P_pad)
    bsum = jnp.sum(b, axis=1)                                          # (P,)
    # Pad with -1e9 so logits of padded polytopes are huge -> raw membership 0.
    bsum = jnp.pad(bsum, (0, P_pad - P), constant_values=-1e9).reshape(1, P_pad)

    Wp = jnp.pad(W, ((0, 0), (0, Dout_pad - Dout), (0, 0)))            # (P, Dout_pad, Din)
    Wflat = jnp.transpose(Wp, (2, 0, 1)).reshape(Din, P * Dout_pad)    # (Din, P*Dout_pad)
    c_row = jnp.pad(c, ((0, 0), (0, Dout_pad - Dout))).reshape(1, P * Dout_pad)
    Wflat_aug = jnp.concatenate(
        [Wflat, c_row,
         jnp.zeros((Din_aug - Din - 1, P * Dout_pad), Wflat.dtype)], axis=0)

    # --- batch tiling + homogeneous coordinate --------------------------------
    TB = min(batch_tile, _round_up(B, 8))
    B_pad = _round_up(B, TB)
    x_aug = jnp.concatenate(
        [x, jnp.ones((B, 1), x.dtype),
         jnp.zeros((B, Din_aug - Din - 1), x.dtype)], axis=1)          # (B, Din_aug)
    x_aug = jnp.pad(x_aug, ((0, B_pad - B), (0, 0)))                   # (B_pad, Din_aug)

    grid = (B_pad // TB,)
    kernel = functools.partial(pgnn_kernel, n_polytopes=P, dout_pad=Dout_pad)

    out = pl.pallas_call(
        kernel,
        out_shape=jax.ShapeDtypeStruct((B_pad, Dout_pad), jnp.float32),
        grid_spec=pltpu.PrefetchScalarGridSpec(
            num_scalar_prefetch=0,
            grid=grid,
            in_specs=[
                pl.BlockSpec((TB, Din_aug), lambda i: (i, 0)),               # x tile
                pl.BlockSpec((Din_aug, P_pad), lambda i: (0, 0)),            # AsumT (resident)
                pl.BlockSpec((1, P_pad), lambda i: (0, 0)),                  # bsum  (resident)
                pl.BlockSpec((Din_aug, P * Dout_pad), lambda i: (0, 0)),     # Wflat_aug (resident)
            ],
            out_specs=pl.BlockSpec((TB, Dout_pad), lambda i: (i, 0)),
        ),
        compiler_params=pltpu.CompilerParams(
            dimension_semantics=("parallel",),
            vmem_limit_bytes=64 * 1024 * 1024,
        ),
    )(x_aug, AsumT, bsum, Wflat_aug)

    return out[:B, :Dout]


def pgnn_reference(x, A, b, W, c):
    """Pure-JAX reference matching the PyTorch module exactly."""
    ineq = jnp.einsum('ijk,nk->nij', A, x) - b[None, :, :]      # (B, P, Din)
    raw = jax.nn.sigmoid(-jnp.sum(ineq, axis=2))                # (B, P)
    m = raw / (jnp.sum(raw, axis=1, keepdims=True) + 1e-6)
    lin = jnp.einsum('nk,iok->nio', x, W) + c[None, :, :]       # (B, P, Dout)
    return jnp.sum(m[:, :, None] * lin, axis=1)


if __name__ == "__main__":
    # Small, deterministic problem: batch=8, input_dim=16, output_dim=8, 4 polytopes.
    B, Din, Dout, P = 8, 16, 8, 4
    key = jax.random.PRNGKey(0)
    kx, kA, kb, kW, kc = jax.random.split(key, 5)

    x = jax.random.normal(kx, (B, Din), dtype=jnp.float32)
    A = jax.random.normal(kA, (P, Din, Din), dtype=jnp.float32)
    b = jax.random.normal(kb, (P, Din), dtype=jnp.float32)
    W = jax.random.normal(kW, (P, Dout, Din), dtype=jnp.float32)
    c = jax.random.normal(kc, (P, Dout), dtype=jnp.float32)

    out = pgnn_forward(x, A, b, W, c)
    out = jax.block_until_ready(out)

    ref = pgnn_reference(x, A, b, W, c)
    assert out.shape == (B, Dout)
    assert jnp.allclose(out, ref, atol=1e-4, rtol=1e-4), "Pallas kernel mismatch vs reference"

    print("KERNEL_OK")
</pallas_src>

<mosaic_0001>
module attributes {stable_mosaic.version = 11 : i64} {
  func.func @pgnn_kernel(%arg0: i32, %arg1: memref<8x24xf32, #tpu.memory_space<vmem>>, %arg2: memref<24x128xf32, #tpu.memory_space<vmem>>, %arg3: memref<1x128xf32, #tpu.memory_space<vmem>>, %arg4: memref<24x512xf32, #tpu.memory_space<vmem>>, %arg5: memref<8x128xf32, #tpu.memory_space<vmem>>) attributes {dimension_semantics = [#tpu.dimension_semantics<parallel>], iteration_bounds = array<i64: 1>, scalar_prefetch = 0 : i64, scratch_operands = 0 : i64, tpu.core_type = #tpu.core_type<tc>, window_params = [{transform_indices = @transform_0, window_bounds = array<i64: 8, 24>}, {pipeline_mode = #tpu.pipeline_mode<synchronous>, transform_indices = @transform_1, window_bounds = array<i64: 24, 128>}, {pipeline_mode = #tpu.pipeline_mode<synchronous>, transform_indices = @transform_2, window_bounds = array<i64: 1, 128>}, {pipeline_mode = #tpu.pipeline_mode<synchronous>, transform_indices = @transform_3, window_bounds = array<i64: 24, 512>}, {transform_indices = @transform_4, window_bounds = array<i64: 8, 128>}]} {
    %c0 = arith.constant 0 : index
    %c0_0 = arith.constant 0 : index
    %0 = vector.load %arg1[%c0, %c0_0] : memref<8x24xf32, #tpu.memory_space<vmem>>, vector<8x24xf32>
    %c0_1 = arith.constant 0 : index
    %c0_2 = arith.constant 0 : index
    %1 = vector.load %arg2[%c0_1, %c0_2] : memref<24x128xf32, #tpu.memory_space<vmem>>, vector<24x128xf32>
    %c0_3 = arith.constant 0 : index
    %c0_4 = arith.constant 0 : index
    %2 = vector.load %arg3[%c0_3, %c0_4] : memref<1x128xf32, #tpu.memory_space<vmem>>, vector<1x128xf32>
    %c0_5 = arith.constant 0 : index
    %c0_6 = arith.constant 0 : index
    %3 = vector.load %arg4[%c0_5, %c0_6] : memref<24x512xf32, #tpu.memory_space<vmem>>, vector<24x512xf32>
    %cst = arith.constant dense<0.000000e+00> : vector<8x128xf32>
    %4 = tpu.matmul %0, %1, %cst {dimension_numbers = #tpu.dot_dimension_numbers<[1], [0], [0], [1], [0, 0, 1, 1], [], []>} : vector<8x24xf32>, vector<24x128xf32>, vector<8x128xf32> -> vector<8x128xf32>
    %5 = vector.broadcast %2 : vector<1x128xf32> to vector<8x128xf32>
    %6 = arith.subf %4, %5 : vector<8x128xf32>
    %cst_7 = arith.constant 0.000000e+00 : f32
    %7 = vector.broadcast %cst_7 : f32 to vector<8x128xf32>
    %8 = arith.subf %7, %6 : vector<8x128xf32>
    %9 = arith.negf %8 : vector<8x128xf32>
    %10 = math.exp %9 : vector<8x128xf32>
    %cst_8 = arith.constant 1.000000e+00 : f32
    %11 = vector.broadcast %cst_8 : f32 to vector<8x128xf32>
    %12 = arith.addf %11, %10 : vector<8x128xf32>
    %13 = arith.divf %11, %12 : vector<8x128xf32>
    %cst_9 = arith.constant dense<0.000000e+00> : vector<8xf32>
    %14 = vector.multi_reduction <add>, %13, %cst_9 [1] : vector<8x128xf32> to vector<8xf32>
    %15 = vector.shape_cast %14 : vector<8xf32> to vector<8x1xf32>
    %cst_10 = arith.constant 9.99999997E-7 : f32
    %16 = vector.broadcast %cst_10 : f32 to vector<8x1xf32>
    %17 = arith.addf %15, %16 : vector<8x1xf32>
    %18 = tpu.reciprocal %17 : vector<8x1xf32> -> vector<8x1xf32>
    %19 = vector.broadcast %18 : vector<8x1xf32> to vector<8x128xf32>
    %20 = arith.mulf %13, %19 : vector<8x128xf32>
    %21 = vector.extract_strided_slice %20 {offsets = [0, 0], sizes = [8, 4], strides = [1, 1]} : vector<8x128xf32> to vector<8x4xf32>
    %cst_11 = arith.constant dense<0.000000e+00> : vector<8x512xf32>
    %22 = tpu.matmul %0, %3, %cst_11 {dimension_numbers = #tpu.dot_dimension_numbers<[1], [0], [0], [1], [0, 0, 1, 1], [], []>} : vector<8x24xf32>, vector<24x512xf32>, vector<8x512xf32> -> vector<8x512xf32>
    %23 = vector.shape_cast %22 : vector<8x512xf32> to vector<8x4x128xf32>
    %24 = vector.shape_cast %21 : vector<8x4xf32> to vector<8x4x1xf32>
    %25 = vector.broadcast %24 : vector<8x4x1xf32> to vector<8x4x128xf32>
    %26 = arith.mulf %25, %23 : vector<8x4x128xf32>
    %cst_12 = arith.constant dense<0.000000e+00> : vector<8x128xf32>
    %27 = vector.multi_reduction <add>, %26, %cst_12 [1] : vector<8x4x128xf32> to vector<8x128xf32>
    %c0_13 = arith.constant 0 : index
    %c0_14 = arith.constant 0 : index
    %28 = vector.load %arg5[%c0_13, %c0_14] : memref<8x128xf32, #tpu.memory_space<vmem>>, vector<8x128xf32>
    tpu.vector_store %arg5[%c0_13, %c0_14], %27 {strides = array<i32>} : memref<8x128xf32, #tpu.memory_space<vmem>>, vector<8x128xf32>,
    return
  }
  func.func @transform_0(%arg0: i32) -> (i32, i32) {
    %c0_i32 = arith.constant 0 : i32
    %c0_i32_0 = arith.constant 0 : i32
    return %arg0, %c0_i32 : i32, i32
  }
  func.func @transform_1(%arg0: i32) -> (i32, i32) {
    %c0_i32 = arith.constant 0 : i32
    %c0_i32_0 = arith.constant 0 : i32
    %c0_i32_1 = arith.constant 0 : i32
    return %c0_i32, %c0_i32_0 : i32, i32
  }
  func.func @transform_2(%arg0: i32) -> (i32, i32) {
    %c0_i32 = arith.constant 0 : i32
    %c0_i32_0 = arith.constant 0 : i32
    %c0_i32_1 = arith.constant 0 : i32
    return %c0_i32, %c0_i32_0 : i32, i32
  }
  func.func @transform_3(%arg0: i32) -> (i32, i32) {
    %c0_i32 = arith.constant 0 : i32
    %c0_i32_0 = arith.constant 0 : i32
    %c0_i32_1 = arith.constant 0 : i32
    return %c0_i32, %c0_i32_0 : i32, i32
  }
  func.func @transform_4(%arg0: i32) -> (i32, i32) {
    %c0_i32 = arith.constant 0 : i32
    %c0_i32_0 = arith.constant 0 : i32
    return %arg0, %c0_i32 : i32, i32
  }
}

</mosaic_0001>

<llo_original>
// kernel: tpu_custom_call.1
$region0: #{tpu_custom_call.1}
  #allocation0 [shape = 'u32[]', space=smem, size = 0x4, offset = 0x4, fixed_abs, tag = 'smem constant byte address 0x4 - core index']
  #allocation1 [shape = 'u32[72,128]{1,0:T(1,128)}', space=vmem, size = 0x9000, scoped, tag = 'internal scratch']
  %s0 = inlined_call_operand.hbm [shape: f32[8,24], index: 0, kind: input, shape index: {}]
  %s1 = inlined_call_operand.hbm [shape: f32[24,128], index: 1, kind: input, shape index: {}]
  %s2 = inlined_call_operand.vmem [shape: f32[1,128], index: 2, kind: input, shape index: {}]
  %s3 = inlined_call_operand.hbm [shape: f32[24,512], index: 3, kind: input, shape index: {}]
  %s4 = inlined_call_operand.hbm [shape: f32[8,128], index: 4, kind: output, shape index: {}]
  %s5 = sld [smem:[#allocation0]]
  $region38: #{tpu_custom_call.1} parent=0
    _
  %s7 = ssub.s32 1, %s5
  %s8 = scalar_select 0, %s7, %s5
  $region1: #{tpu_custom_call.1} parent=0
    #allocation2 [shape = 'u8[4096]{0}', space=vmem, size = 0x1000, scoped, tag = 'input window, operand 0, single buffered']
    #allocation3 [shape = 's32[1]{0}', space=sflag, size = 0x4, scoped, tag = 'scoped memory for tpu_custom_call.1']
    #allocation4 [shape = 's32[1]{0}', space=sflag, size = 0x4, scoped, tag = 'scoped memory for tpu_custom_call.1']
    #allocation5 [shape = 'u8[12288]{0}', space=vmem, size = 0x3000, scoped, tag = 'input window, operand 1, single buffered']
    #allocation6 [shape = 's32[1]{0}', space=sflag, size = 0x4, scoped, tag = 'scoped memory for tpu_custom_call.1']
    #allocation7 [shape = 'u8[49152]{0}', space=vmem, size = 0xc000, scoped, tag = 'input window, operand 3, single buffered']
    #allocation8 [shape = 'u8[4096]{0}', space=vmem, size = 0x1000, scoped, tag = 'output window, operand 0, single buffered']
    %9 = vsyncpa [#allocation3], 0
    %10 = vsyncpa [#allocation6], 0
    %11 = vsyncpa [#allocation4], 0
    // Predicated region
    $region2: #{tpu_custom_call.1} parent=1 // pred_check
      _
    $region3: #{tpu_custom_call.1} parent=1 // pred_check_branch
      %13 = sbr.rel (0) target = $region5
    $region4: #{tpu_custom_call.1} parent=1 // pred_region
      %15 = vsyncadd [#allocation3], 0
      %s17 = sshll.u32 %s0, 4
      %s18 = int_to_ptr.hbm [resolvable:$true] %s17
      %s19 = sshll.u32 [#allocation2], 4
      %s20 = int_to_ptr.vmem [resolvable:$true] %s19
      %22 = dma.hbm_to_vmem [thread:$0]  %s18, 128, %s20, [#allocation3]
    $region5: #{tpu_custom_call.1} parent=1 // pred_fallthru
      _
    // Predicated region
    $region6: #{tpu_custom_call.1} parent=1 // pred_check
      _
    $region7: #{tpu_custom_call.1} parent=1 // pred_check_branch
      %24 = sbr.rel (0) target = $region9
    $region8: #{tpu_custom_call.1} parent=1 // pred_region
      %26 = vsyncadd [#allocation6], 0
      %s27 = sshll.u32 %s1, 4
      %s28 = int_to_ptr.hbm [resolvable:$true] %s27
      %s29 = sshll.u32 [#allocation5], 4
      %s30 = int_to_ptr.vmem [resolvable:$true] %s29
      %35 = dma.hbm_to_vmem [thread:$0]  %s28, 384, %s30, [#allocation6], 128, 128, 8
    $region9: #{tpu_custom_call.1} parent=1 // pred_fallthru
      _
    // Predicated region
    $region10: #{tpu_custom_call.1} parent=1 // pred_check
      _
    $region11: #{tpu_custom_call.1} parent=1 // pred_check_branch
      %37 = sbr.rel (0) target = $region13
    $region12: #{tpu_custom_call.1} parent=1 // pred_region
      _
    $region13: #{tpu_custom_call.1} parent=1 // pred_fallthru
      _
    // Predicated region
    $region14: #{tpu_custom_call.1} parent=1 // pred_check
      _
    $region15: #{tpu_custom_call.1} parent=1 // pred_check_branch
      %39 = sbr.rel (0) target = $region17
    $region16: #{tpu_custom_call.1} parent=1 // pred_region
      %41 = vsyncadd [#allocation6], 0
      %s42 = sshll.u32 %s3, 4
      %s43 = int_to_ptr.hbm [resolvable:$true] %s42
      %s44 = sshll.u32 [#allocation7], 4
      %s45 = int_to_ptr.vmem [resolvable:$true] %s44
      %50 = dma.hbm_to_vmem [thread:$0]  %s43, 1536, %s45, [#allocation6], 512, 512, 32
    $region17: #{tpu_custom_call.1} parent=1 // pred_fallthru
      _
    // Predicated region
    $region18: #{tpu_custom_call.1} parent=1 // pred_check
      _
    $region19: #{tpu_custom_call.1} parent=1 // pred_check_branch
      %52 = sbr.rel (0) target = $region21
    $region20: #{tpu_custom_call.1} parent=1 // pred_region
      %54 = dma.done [#allocation3], 128
    $region21: #{tpu_custom_call.1} parent=1 // pred_fallthru
      _
    // Predicated region
    $region22: #{tpu_custom_call.1} parent=1 // pred_check
      _
    $region23: #{tpu_custom_call.1} parent=1 // pred_check_branch
      %56 = sbr.rel (0) target = $region25
    $region24: #{tpu_custom_call.1} parent=1 // pred_region
      %58 = dma.done [#allocation6], 384
    $region25: #{tpu_custom_call.1} parent=1 // pred_fallthru
      _
    // Predicated region
    $region26: #{tpu_custom_call.1} parent=1 // pred_check
      _
    $region27: #{tpu_custom_call.1} parent=1 // pred_check_branch
      %60 = sbr.rel (0) target = $region29
    $region28: #{tpu_custom_call.1} parent=1 // pred_region
      %62 = dma.done [#allocation6], 1536
    $region29: #{tpu_custom_call.1} parent=1 // pred_fallthru
      _
    %v63 = vld [vmem:[#allocation2] sm:$0xff]
    %v64 = vld [vmem:[#allocation5] sm:$0xff]
    %v65 = vld [vmem:[#allocation5 + $0x8] sm:$0xff]
    %v66 = vld [vmem:[#allocation5 + $0x10] sm:$0xff]
    %v67 = vld [vmem:[%s2] sm:$0x1]
    %v68 = vld [vmem:[#allocation7] sm:$0xff]
    %v69 = vld [vmem:[#allocation7 + $0x8] sm:$0xff]
    %v70 = vld [vmem:[#allocation7 + $0x10] sm:$0xff]
    %v71 = vld [vmem:[#allocation7 + $0x18] sm:$0xff]
    %v72 = vld [vmem:[#allocation7 + $0x20] sm:$0xff]
    %v73 = vld [vmem:[#allocation7 + $0x28] sm:$0xff]
    %v74 = vld [vmem:[#allocation7 + $0x30] sm:$0xff]
    %v75 = vld [vmem:[#allocation7 + $0x38] sm:$0xff]
    %v76 = vld [vmem:[#allocation7 + $0x40] sm:$0xff]
    %v77 = vld [vmem:[#allocation7 + $0x48] sm:$0xff]
    %v78 = vld [vmem:[#allocation7 + $0x50] sm:$0xff]
    %v79 = vld [vmem:[#allocation7 + $0x58] sm:$0xff]
    %vm80 = vcmask 195584
    %v82 = vsel %vm80, %v63, 0
    %84 = vmatpush.msra.mxu0 0.0
    %85 = vmatpush.msra.mxu0 0.0
    %86 = vmatpush.msra.mxu0 0.0
    %87 = vmatpush.msra.mxu0 0.0
    %88 = vmatpush.msra.mxu0 0.0
    %89 = vmatpush.msra.mxu0 0.0
    %90 = vmatpush.msra.mxu0 0.0
    %91 = vmatpush.msra.mxu0 0.0
    %92 = vmatpush.msra.mxu0 0.0
    %93 = vmatpush.msra.mxu0 0.0
    %94 = vmatpush.msra.mxu0 0.0
    %95 = vmatpush.msra.mxu0 0.0
    %96 = vmatpush.msra.mxu0 0.0
    %97 = vmatpush.msra.mxu0 %v66
    %98 = vmatpush.msra.mxu0 %v65
    %99 = vmatpush.msra.mxu0 %v64
    %100 = vmatmul.f32.gmra.mxu0 %v82
    %v101 = vpop.f32.mrf.mxu0
    %v102 = vadd.f32 0.0, %v101
    %103 = vdwg.mxu0
    %v105 = vperm.slane %v67, 0
    %v107 = vsub.f32 %v102, %v105
    %v108 = vsub.f32 0.0, %v107
    %v109 = vxor.u32 %v108, 2147483648
    %v110 = vmul.f32 %v109, 1.442695
    %v111 = vpow.pop %v110
    %v112 = vadd.f32 %v111, 1.0
    %v113 = vrcp.pop %v112
    %v114 = vmul.f32 %v112, %v113
    %v115 = vsub.f32 1.0, %v114
    %v116 = vmul.f32 %v113, %v115
    %v117 = vadd.f32 %v113, %v116
    %vm118 = vweird.f32 %v112
    %vm119 = vweird.f32 %v113
    %vm120 = vmor %vm118, %vm119
    %v121 = vsel %vm120, %v113, %v117
    %v122 = vand.u32 2147483647, %v112
    %vm123 = vcmp.eq.f32.partialorder %v122, 8.507059e+37
    %v124 = vand.u32 %v112, 2147483648
    %v125 = vor.u32 1.1754944e-38, %v124
    %v126 = vsel %vm123, %v125, %v121
    %v127 = vmul.f32 1.0, %v126
    %128 = vadd.xlane.f32.xlu0 %v127
    %v129 = vpop.xlane.xlu0 %128
    %v130 = vadd.f32 %v129, 1e-06
    %v131 = vrcp.pop %v130
    %v132 = vmul.f32 %v130, %v131
    %v133 = vsub.f32 1.0, %v132
    %v134 = vmul.f32 %v131, %v133
    %v135 = vadd.f32 %v131, %v134
    %vm136 = vweird.f32 %v130
    %vm137 = vweird.f32 %v131
    %vm138 = vmor %vm136, %vm137
    %v139 = vsel %vm138, %v131, %v135
    %v140 = vand.u32 2147483647, %v130
    %vm141 = vcmp.eq.f32.partialorder %v140, 8.507059e+37
    %v142 = vand.u32 %v130, 2147483648
    %v143 = vor.u32 1.1754944e-38, %v142
    %v144 = vsel %vm141, %v143, %v139
    %v145 = vmul.f32 %v127, %v144
    %146 = vmatpush.msra.mxu0 0.0
    %147 = vmatpush.msra.mxu0 0.0
    %148 = vmatpush.msra.mxu0 0.0
    %149 = vmatpush.msra.mxu0 0.0
    %150 = vmatpush.msra.mxu0 0.0
    %151 = vmatpush.msra.mxu0 0.0
    %152 = vmatpush.msra.mxu0 0.0
    %153 = vmatpush.msra.mxu0 0.0
    %154 = vmatpush.msra.mxu0 0.0
    %155 = vmatpush.msra.mxu0 0.0
    %156 = vmatpush.msra.mxu0 0.0
    %157 = vmatpush.msra.mxu0 0.0
    %158 = vmatpush.msra.mxu0 0.0
    %159 = vmatpush.msra.mxu0 %v76
    %160 = vmatpush.msra.mxu0 %v72
    %161 = vmatpush.msra.mxu0 %v68
    %162 = vmatmul.f32.gmra.mxu0 %v82
    %v163 = vpop.f32.mrf.mxu0
    %v164 = vadd.f32 0.0, %v163
    %165 = vdwg.mxu0
    %166 = vmatpush.msra.mxu0 0.0
    %167 = vmatpush.msra.mxu0 0.0
    %168 = vmatpush.msra.mxu0 0.0
    %169 = vmatpush.msra.mxu0 0.0
    %170 = vmatpush.msra.mxu0 0.0
    %171 = vmatpush.msra.mxu0 0.0
    %172 = vmatpush.msra.mxu0 0.0
    %173 = vmatpush.msra.mxu0 0.0
    %174 = vmatpush.msra.mxu0 0.0
    %175 = vmatpush.msra.mxu0 0.0
    %176 = vmatpush.msra.mxu0 0.0
    %177 = vmatpush.msra.mxu0 0.0
    %178 = vmatpush.msra.mxu0 0.0
    %179 = vmatpush.msra.mxu0 %v77
    %180 = vmatpush.msra.mxu0 %v73
    %181 = vmatpush.msra.mxu0 %v69
    %182 = vmatmul.f32.gmra.mxu0 %v82
    %v183 = vpop.f32.mrf.mxu0
    %v184 = vadd.f32 0.0, %v183
    %185 = vdwg.mxu0
    %186 = vmatpush.msra.mxu0 0.0
    %187 = vmatpush.msra.mxu0 0.0
    %188 = vmatpush.msra.mxu0 0.0
    %189 = vmatpush.msra.mxu0 0.0
    %190 = vmatpush.msra.mxu0 0.0
    %191 = vmatpush.msra.mxu0 0.0
    %192 = vmatpush.msra.mxu0 0.0
    %193 = vmatpush.msra.mxu0 0.0
    %194 = vmatpush.msra.mxu0 0.0
    %195 = vmatpush.msra.mxu0 0.0
    %196 = vmatpush.msra.mxu0 0.0
    %197 = vmatpush.msra.mxu0 0.0
    %198 = vmatpush.msra.mxu0 0.0
    %199 = vmatpush.msra.mxu0 %v78
    %200 = vmatpush.msra.mxu0 %v74
    %201 = vmatpush.msra.mxu0 %v70
    %202 = vmatmul.f32.gmra.mxu0 %v82
    %v203 = vpop.f32.mrf.mxu0
    %v204 = vadd.f32 0.0, %v203
    %205 = vdwg.mxu0
    %206 = vmatpush.msra.mxu0 0.0
    %207 = vmatpush.msra.mxu0 0.0
    %208 = vmatpush.msra.mxu0 0.0
    %209 = vmatpush.msra.mxu0 0.0
    %210 = vmatpush.msra.mxu0 0.0
    %211 = vmatpush.msra.mxu0 0.0
    %212 = vmatpush.msra.mxu0 0.0
    %213 = vmatpush.msra.mxu0 0.0
    %214 = vmatpush.msra.mxu0 0.0
    %215 = vmatpush.msra.mxu0 0.0
    %216 = vmatpush.msra.mxu0 0.0
    %217 = vmatpush.msra.mxu0 0.0
    %218 = vmatpush.msra.mxu0 0.0
    %219 = vmatpush.msra.mxu0 %v79
    %220 = vmatpush.msra.mxu0 %v75
    %221 = vmatpush.msra.mxu0 %v71
    %222 = vmatmul.f32.gmra.mxu0 %v82
    %v223 = vpop.f32.mrf.mxu0
    %v224 = vadd.f32 0.0, %v223
    %225 = vdwg.mxu0
    %v226 = vrot.slane %v204, 4
    %vm227 = vcmask 1047556
    %v228 = vsel %vm227, %v226, %v164
    %v229 = vrot.slane %v164, 4
    %v230 = vsel %vm227, %v204, %v229
    %v232 = vunpack.c.l.s4 1983009808
    %v233 = vunpack.c.0.s8 %v232
    %v234 = vperm.slane %v228, %v233
    %v236 = vunpack.c.l.s4 1983009808
    %v237 = vunpack.c.0.s8 %v236
    %v238 = vperm.slane %v230, %v237
    %v239 = vrot.slane %v224, 4
    %v240 = vsel %vm227, %v239, %v184
    %v241 = vrot.slane %v184, 4
    %v242 = vsel %vm227, %v224, %v241
    %v244 = vunpack.c.l.s4 1983009808
    %v245 = vunpack.c.0.s8 %v244
    %v246 = vperm.slane %v240, %v245
    %v248 = vunpack.c.l.s4 1983009808
    %v249 = vunpack.c.0.s8 %v248
    %v250 = vperm.slane %v242, %v249
    %v251 = vrot.slane %v246, 4
    %v252 = vsel %vm227, %v251, %v234
    %v253 = vrot.slane %v234, 4
    %v254 = vsel %vm227, %v246, %v253
    %v256 = vunpack.c.l.s4 1934713408
    %v257 = vunpack.c.0.s8 %v256
    %v258 = vperm.slane %v252, %v257
    %v260 = vunpack.c.l.s4 1934713408
    %v261 = vunpack.c.0.s8 %v260
    %v262 = vperm.slane %v254, %v261
    %v263 = vrot.slane %v250, 4
    %v264 = vsel %vm227, %v263, %v238
    %v265 = vrot.slane %v238, 4
    %v266 = vsel %vm227, %v250, %v265
    %v268 = vunpack.c.l.s4 1934713408
    %v269 = vunpack.c.0.s8 %v268
    %v270 = vperm.slane %v264, %v269
    %v272 = vunpack.c.l.s4 1934713408
    %v273 = vunpack.c.0.s8 %v272
    %v274 = vperm.slane %v266, %v273
    %v275 = vrot.slane %v258, 4
    %v276 = vsel %vm227, 0.0, %v275
    %v277 = vrot.slane %v262, 4
    %v278 = vsel %vm227, 0.0, %v277
    %v279 = vrot.slane %v270, 4
    %v280 = vsel %vm227, 0.0, %v279
    %v281 = vrot.slane %v274, 4
    %v282 = vsel %vm227, 0.0, %v281
    %v283 = vperm.slane %v145, 0
    %v284 = vlaneseq
    %v285 = vshrl.u32 %v284, 7
    %287 = vset.pattern.permute.xlu0 %v285
    %288 = vperm.xlu0 %287, %v283
    %v289 = vpop.permute.xlu0 %288
    %v290 = vperm.slane %v145, 1
    %v291 = vlaneseq
    %v292 = vshrl.u32 %v291, 7
    %294 = vset.pattern.permute.xlu0 %v292
    %295 = vperm.xlu0 %294, %v290
    %v296 = vpop.permute.xlu0 %295
    %v297 = vperm.slane %v145, 2
    %v298 = vlaneseq
    %v299 = vshrl.u32 %v298, 7
    %301 = vset.pattern.permute.xlu0 %v299
    %302 = vperm.xlu0 %301, %v297
    %v303 = vpop.permute.xlu0 %302
    %v304 = vperm.slane %v145, 3
    %v305 = vlaneseq
    %v306 = vshrl.u32 %v305, 7
    %308 = vset.pattern.permute.xlu0 %v306
    %309 = vperm.xlu0 %308, %v304
    %v310 = vpop.permute.xlu0 %309
    %v311 = vperm.slane %v145, 4
    %v312 = vlaneseq
    %v313 = vshrl.u32 %v312, 7
    %315 = vset.pattern.permute.xlu0 %v313
    %316 = vperm.xlu0 %315, %v311
    %v317 = vpop.permute.xlu0 %316
    %v318 = vperm.slane %v145, 5
    %v319 = vlaneseq
    %v320 = vshrl.u32 %v319, 7
    %322 = vset.pattern.permute.xlu0 %v320
    %323 = vperm.xlu0 %322, %v318
    %v324 = vpop.permute.xlu0 %323
    %v325 = vperm.slane %v145, 6
    %v326 = vlaneseq
    %v327 = vshrl.u32 %v326, 7
    %329 = vset.pattern.permute.xlu0 %v327
    %330 = vperm.xlu0 %329, %v325
    %v331 = vpop.permute.xlu0 %330
    %v332 = vperm.slane %v145, 7
    %v333 = vlaneseq
    %v334 = vshrl.u32 %v333, 7
    %336 = vset.pattern.permute.xlu0 %v334
    %337 = vperm.xlu0 %336, %v332
    %v338 = vpop.permute.xlu0 %337
    %v339 = vmul.f32 %v289, %v258
    %v340 = vmul.f32 %v296, %v276
    %v341 = vmul.f32 %v303, %v262
    %v342 = vmul.f32 %v310, %v278
    %v343 = vmul.f32 %v317, %v270
    %v344 = vmul.f32 %v324, %v280
    %v345 = vmul.f32 %v331, %v274
    %v346 = vmul.f32 %v338, %v282
    %vm347 = vcmask 1043456
    %v348 = vsel %vm347, %v339, 0.0
    %v349 = vrot.slane %v348, 4
    %v350 = vadd.f32 %v348, %v349
    %v351 = vrot.slane %v350, 2
    %v352 = vadd.f32 %v350, %v351
    %v353 = vrot.slane %v352, 1
    %v354 = vadd.f32 %v352, %v353
    %v355 = vsel %vm347, %v340, 0.0
    %v356 = vrot.slane %v355, 4
    %v357 = vadd.f32 %v355, %v356
    %v358 = vrot.slane %v357, 2
    %v359 = vadd.f32 %v357, %v358
    %v360 = vrot.slane %v359, 1
    %v361 = vadd.f32 %v359, %v360
    %v362 = vsel %vm347, %v341, 0.0
    %v363 = vrot.slane %v362, 4
    %v364 = vadd.f32 %v362, %v363
    %v365 = vrot.slane %v364, 2
    %v366 = vadd.f32 %v364, %v365
    %v367 = vrot.slane %v366, 1
    %v368 = vadd.f32 %v366, %v367
    %v369 = vsel %vm347, %v342, 0.0
    %v370 = vrot.slane %v369, 4
    %v371 = vadd.f32 %v369, %v370
    %v372 = vrot.slane %v371, 2
    %v373 = vadd.f32 %v371, %v372
    %v374 = vrot.slane %v373, 1
    %v375 = vadd.f32 %v373, %v374
    %v376 = vsel %vm347, %v343, 0.0
    %v377 = vrot.slane %v376, 4
    %v378 = vadd.f32 %v376, %v377
    %v379 = vrot.slane %v378, 2
    %v380 = vadd.f32 %v378, %v379
    %v381 = vrot.slane %v380, 1
    %v382 = vadd.f32 %v380, %v381
    %v383 = vsel %vm347, %v344, 0.0
    %v384 = vrot.slane %v383, 4
    %v385 = vadd.f32 %v383, %v384
    %v386 = vrot.slane %v385, 2
    %v387 = vadd.f32 %v385, %v386
    %v388 = vrot.slane %v387, 1
    %v389 = vadd.f32 %v387, %v388
    %v390 = vsel %vm347, %v345, 0.0
    %v391 = vrot.slane %v390, 4
    %v392 = vadd.f32 %v390, %v391
    %v393 = vrot.slane %v392, 2
    %v394 = vadd.f32 %v392, %v393
    %v395 = vrot.slane %v394, 1
    %v396 = vadd.f32 %v394, %v395
    %v397 = vsel %vm347, %v346, 0.0
    %v398 = vrot.slane %v397, 4
    %v399 = vadd.f32 %v397, %v398
    %v400 = vrot.slane %v399, 2
    %v401 = vadd.f32 %v399, %v400
    %v402 = vrot.slane %v401, 1
    %v403 = vadd.f32 %v401, %v402
    %vm412 = vcmask 1041409
    %v413 = vsel %vm412, %v361, %v354
    %vm414 = vcmask 1042434
    %v415 = vsel %vm414, %v368, %v413
    %vm416 = vcmask 1043459
    %v417 = vsel %vm416, %v375, %v415
    %vm418 = vcmask 1044484
    %v419 = vsel %vm418, %v382, %v417
    %vm420 = vcmask 1045509
    %v421 = vsel %vm420, %v389, %v419
    %vm422 = vcmask 1046534
    %v423 = vsel %vm422, %v396, %v421
    %vm424 = vcmask 1047559
    %v425 = vsel %vm424, %v403, %v423
    %427 = vst [vmem:[#allocation8] sm:$0xff] %v425
    // Predicated region
    $region30: #{tpu_custom_call.1} parent=1 // pred_check
      _
    $region31: #{tpu_custom_call.1} parent=1 // pred_check_branch
      %429 = sbr.rel (0) target = $region33
    $region32: #{tpu_custom_call.1} parent=1 // pred_region
      %431 = vsyncadd [#allocation4], 0
      %s433 = sshll.u32 [#allocation8], 4
      %s434 = int_to_ptr.vmem [resolvable:$true] %s433
      %s435 = sshll.u32 %s4, 4
      %s436 = int_to_ptr.hbm [resolvable:$true] %s435
      %438 = dma.vmem_to_hbm [thread:$0]  %s434, 128, %s436, [#allocation4]
    $region33: #{tpu_custom_call.1} parent=1 // pred_fallthru
      _
    // Predicated region
    $region34: #{tpu_custom_call.1} parent=1 // pred_check
      _
    $region35: #{tpu_custom_call.1} parent=1 // pred_check_branch
      %440 = sbr.rel (0) target = $region37
    $region36: #{tpu_custom_call.1} parent=1 // pred_region
      %442 = dma.done [#allocation4], 128
    $region37: #{tpu_custom_call.1} parent=1 // pred_fallthru
      _
    %443 = vsyncpa [#allocation3], 1
    %444 = vsyncpa [#allocation6], 1
    %445 = vsyncpa [#allocation4], 1

</llo_original>
